<compile_context>
chip_gen: v5e
topology: v5e:2x2
jax: 0.10.0
libtpu: 0.0.40
codegen_flags: <defaults>
</compile_context>

<pallas_src>
import functools

import jax
import jax.numpy as jnp
import numpy as np
from jax.experimental import pallas as pl
from jax.experimental.pallas import tpu as pltpu


_VMEM_BUDGET_BYTES = 40 * 1024 * 1024   # working-set budget for the (C, tile) slabs
_VMEM_LIMIT_BYTES = 48 * 1024 * 1024    # scoped VMEM request (< 64 MiB => v7x-safe)
_MAX_TILE_HW = 32768                    # lane-dense pixels per grid step (mult. of 128)


def _pixel_ce_kernel(logits_ref, labels_ref, loss_ref, sum_ref, cnt_ref, *,
                     ignore_lb, hw, tile_hw, thresh_val):
    """Per-pixel CE with ignore_index + fused > thresh partial sum/count.

    logits_ref: (1, C, T)   -- classes on sublanes, pixels on lanes
    labels_ref: (1, 1, T)   int32
    loss_ref:   (1, 1, T)   f32 (lane-dense output)
    sum_ref:    (1, 1, 1, 128) f32 -- block-partial sum(loss where loss > thresh)
    cnt_ref:    (1, 1, 1, 128) f32 -- block-partial count(loss > thresh)
    """
    x = logits_ref[0].astype(jnp.float32)               # (C, T); cast stays in-kernel
    lbl = labels_ref[0]                                  # (1, T) int32

    # Mask the ragged tail of the pixel axis (treated as ignore -> loss 0).
    t = pl.program_id(1)
    lane = jax.lax.broadcasted_iota(jnp.int32, (1, x.shape[-1]), 1)   # (1, T)
    in_range = (t * tile_hw + lane) < hw

    valid = jnp.logical_and(lbl != ignore_lb, in_range)               # (1, T)
    safe_lbl = jnp.where(valid, lbl, 0)                               # (1, T)

    # Max-shifted logits; both the logsumexp and the gathered logit use xm, so
    # the `m` terms cancel exactly:  (lse - m) - (picked - m) = lse - picked.
    m = jnp.max(x, axis=0, keepdims=True)                             # (1, T)
    xm = x - m                                                        # (C, T)
    lse_m = jnp.log(jnp.sum(jnp.exp(xm), axis=0, keepdims=True))      # (1, T)

    class_ids = jax.lax.broadcasted_iota(jnp.int32, x.shape, 0)       # (C, T)
    picked_m = jnp.sum(jnp.where(class_ids == safe_lbl, xm, 0.0),
                       axis=0, keepdims=True)                         # (1, T)

    # CrossEntropyLoss(reduction='none', ignore_index=ignore_lb).
    loss_vec = jnp.where(valid, lse_m - picked_m, jnp.float32(0.0))   # (1, T)
    loss_ref[0] = loss_vec

    # Fused OHEM threshold partials (values already live in vregs).
    gt = jnp.logical_and(loss_vec > thresh_val, in_range)             # (1, T)
    masked = jnp.where(gt, loss_vec, jnp.float32(0.0))
    sum_ref[0, 0] = jnp.broadcast_to(
        jnp.sum(masked, axis=-1, keepdims=True), (1, 128))
    cnt_ref[0, 0] = jnp.broadcast_to(
        jnp.sum(gt.astype(jnp.float32), axis=-1, keepdims=True), (1, 128))


def _pixel_ce_pallas(logits_nc_hw, labels_n1_hw, ignore_lb, thresh_val,
                     tile_hw=None):
    """logits (N,C,HW), labels (N,1,HW) i32 -> (loss (N,1,HW) f32, sum_p, cnt_p)."""
    N, C, HW = logits_nc_hw.shape

    if tile_hw is None:
        # Size the lane tile so (2 double-buffered input blocks + ~4 f32
        # temporaries) per (class, pixel) fits the VMEM budget; cap at 32K
        # lanes (>= ~1 MB of bf16 logits/step at C=19, far above the ~0.35 us
        # per-grid-step amortization threshold on v5e/v6e/v7x).
        bytes_per_pixel = C * (2 * logits_nc_hw.dtype.itemsize + 4 * 4)
        tile_hw = min(_MAX_TILE_HW,
                      max(128, (_VMEM_BUDGET_BYTES // bytes_per_pixel) // 128 * 128))

    tile = HW if HW <= tile_hw else tile_hw
    num_t = pl.cdiv(HW, tile)

    kernel = functools.partial(
        _pixel_ce_kernel, ignore_lb=ignore_lb, hw=HW, tile_hw=tile,
        thresh_val=thresh_val)

    loss, sum_p, cnt_p = pl.pallas_call(
        kernel,
        out_shape=(
            jax.ShapeDtypeStruct((N, 1, HW), jnp.float32),
            jax.ShapeDtypeStruct((N, num_t, 1, 128), jnp.float32),
            jax.ShapeDtypeStruct((N, num_t, 1, 128), jnp.float32),
        ),
        grid_spec=pltpu.PrefetchScalarGridSpec(
            num_scalar_prefetch=0,
            grid=(N, num_t),
            in_specs=[
                pl.BlockSpec((1, C, tile), lambda n, t: (n, 0, t)),
                pl.BlockSpec((1, 1, tile), lambda n, t: (n, 0, t)),
            ],
            out_specs=[
                pl.BlockSpec((1, 1, tile), lambda n, t: (n, 0, t)),
                pl.BlockSpec((1, 1, 1, 128), lambda n, t: (n, t, 0, 0)),
                pl.BlockSpec((1, 1, 1, 128), lambda n, t: (n, t, 0, 0)),
            ],
        ),
        compiler_params=pltpu.CompilerParams(
            dimension_semantics=("parallel", "parallel"),
            vmem_limit_bytes=_VMEM_LIMIT_BYTES),
    )(logits_nc_hw, labels_n1_hw)
    return loss, sum_p, cnt_p


def ohem_ce_loss(logits_nchw, labels_nhw, thresh, n_min, ignore_lb=255,
                 tile_hw=None):
    """Forward pass of OhemCELoss (scalar output, float32)."""
    N, C, H, W = logits_nchw.shape
    HW = H * W
    # NCHW-native: contiguous reshape only (no transpose; bf16 logits stay bf16
    # over HBM, the f32 cast happens inside the kernel).
    x = logits_nchw.reshape(N, C, HW)
    # TODO(synk): labels could be fed as int8/int16 over HBM (~2.5% vs ~10% of
    # the logits traffic) and widened in-kernel; kept int32 for layout safety.
    y = labels_nhw.reshape(N, 1, HW).astype(jnp.int32)

    # self.thresh = -log(thresh), computed in float32 like the PyTorch module;
    # baked into the kernel as a static constant.
    thresh_val = float(np.float32(-np.log(np.float32(thresh))))

    per_pixel, sum_p, cnt_p = _pixel_ce_pallas(x, y, ignore_lb, thresh_val,
                                               tile_hw=tile_hw)
    per_pixel = per_pixel.reshape(N * HW)

    # Partials were lane-broadcast inside the kernel; lane 0 carries the value.
    sum_gt = jnp.sum(sum_p[..., 0])
    cnt_gt = jnp.sum(cnt_p[..., 0])

    # sorted_desc[n_min] > thresh  <=>  count(loss > thresh) > n_min.
    cond = cnt_gt > jnp.float32(n_min)

    def _mean_gt(_):
        # mean(loss[loss > thresh]); cnt_gt >= n_min + 1 >= 1 on this branch.
        return sum_gt / jnp.maximum(cnt_gt, 1.0)

    def _mean_topk(_):
        # Rare fallback: mean of the n_min largest losses.  top_k only runs
        # when this branch is actually taken (lax.cond, not jnp.where).
        topk, _ = jax.lax.top_k(per_pixel, n_min)
        return jnp.sum(topk) / jnp.float32(n_min)

    return jax.lax.cond(cond, _mean_gt, _mean_topk, None)


def _reference(logits_nchw, labels_nhw, thresh, n_min, ignore_lb=255):
    """Pure-JAX reference mirroring the PyTorch forward, for sanity checking."""
    N, C, H, W = logits_nchw.shape
    x = jnp.transpose(logits_nchw, (0, 2, 3, 1)).reshape(-1, C).astype(jnp.float32)
    y = labels_nhw.reshape(-1)
    valid = y != ignore_lb
    safe = jnp.where(valid, y, 0)
    lse = jax.scipy.special.logsumexp(x, axis=-1)
    picked = jnp.take_along_axis(x, safe[:, None], axis=-1)[:, 0]
    loss = jnp.where(valid, lse - picked, 0.0)
    thresh_val = -jnp.log(jnp.float32(thresh))
    sorted_desc = -jnp.sort(-loss)
    cond = sorted_desc[n_min] > thresh_val
    gt = loss > thresh_val
    mean_gt = jnp.sum(jnp.where(gt, loss, 0.0)) / jnp.maximum(
        jnp.sum(gt.astype(jnp.float32)), 1.0)
    mean_top = jnp.sum(sorted_desc[:n_min]) / jnp.float32(n_min)
    return jnp.where(cond, mean_gt, mean_top)


def _check(logits, labels, thresh, n_min, ignore_lb=255, tile_hw=None):
    out = jax.block_until_ready(
        ohem_ce_loss(logits, labels, thresh, n_min, ignore_lb, tile_hw=tile_hw))
    ref = jax.block_until_ready(
        _reference(logits, labels, thresh, n_min, ignore_lb))
    np.testing.assert_allclose(np.asarray(out), np.asarray(ref),
                               rtol=1e-5, atol=1e-5)


if __name__ == "__main__":
    key = jax.random.PRNGKey(0)
    k_logit, k_label, k_logit2, k_label2 = jax.random.split(key, 4)

    # Case 1: common (threshold) branch.
    N, C, H, W = 2, 8, 16, 16
    logits = jax.random.normal(k_logit, (N, C, H, W), dtype=jnp.float32) * 2.0
    labels = jax.random.randint(k_label, (N, H, W), 0, C, dtype=jnp.int32)
    labels = labels.at[:, 0, :].set(255)         # some ignore_index pixels
    _check(logits, labels, thresh=0.7, n_min=(N * H * W) // 16)

    # Case 2: same data, tiny thresh -> exercises the top_k fallback branch.
    _check(logits, labels, thresh=0.001, n_min=(N * H * W) // 8)

    # Case 3: multi-tile grid with a ragged (masked) last pixel block.
    N2, C2, H2, W2 = 2, 8, 16, 24
    logits2 = jax.random.normal(k_logit2, (N2, C2, H2, W2), dtype=jnp.float32) * 2.0
    labels2 = jax.random.randint(k_label2, (N2, H2, W2), 0, C2, dtype=jnp.int32)
    labels2 = labels2.at[:, :, 0].set(255)
    _check(logits2, labels2, thresh=0.7, n_min=(N2 * H2 * W2) // 16, tile_hw=256)

    print("KERNEL_OK")
</pallas_src>

<mosaic_0001>
module attributes {stable_mosaic.version = 11 : i64} {
  func.func @_pixel_ce_kernel(%arg0: i32, %arg1: i32, %arg2: memref<1x8x256xf32, #tpu.memory_space<vmem>>, %arg3: memref<1x1x256xi32, #tpu.memory_space<vmem>>, %arg4: memref<1x1x256xf32, #tpu.memory_space<vmem>>, %arg5: memref<1x1x1x128xf32, #tpu.memory_space<vmem>>, %arg6: memref<1x1x1x128xf32, #tpu.memory_space<vmem>>) attributes {dimension_semantics = [#tpu.dimension_semantics<parallel>, #tpu.dimension_semantics<parallel>], iteration_bounds = array<i64: 2, 1>, scalar_prefetch = 0 : i64, scratch_operands = 0 : i64, tpu.core_type = #tpu.core_type<tc>, window_params = [{transform_indices = @transform_0, window_bounds = array<i64: 1, 8, 256>}, {transform_indices = @transform_1, window_bounds = array<i64: 1, 1, 256>}, {transform_indices = @transform_2, window_bounds = array<i64: 1, 1, 256>}, {transform_indices = @transform_3, window_bounds = array<i64: 1, 1, 1, 128>}, {transform_indices = @transform_4, window_bounds = array<i64: 1, 1, 1, 128>}]} {
    %c0 = arith.constant 0 : index
    %c0_0 = arith.constant 0 : index
    %c0_1 = arith.constant 0 : index
    %0 = vector.load %arg2[%c0, %c0_0, %c0_1] : memref<1x8x256xf32, #tpu.memory_space<vmem>>, vector<1x8x256xf32>
    %1 = vector.shape_cast %0 : vector<1x8x256xf32> to vector<8x256xf32>
    %c0_2 = arith.constant 0 : index
    %c0_3 = arith.constant 0 : index
    %c0_4 = arith.constant 0 : index
    %2 = vector.load %arg3[%c0_2, %c0_3, %c0_4] : memref<1x1x256xi32, #tpu.memory_space<vmem>>, vector<1x1x256xi32>
    %3 = vector.shape_cast %2 : vector<1x1x256xi32> to vector<1x256xi32>
    %4 = tpu.iota {dimensions = array<i32: 1>} : vector<1x256xi32>
    %c256_i32 = arith.constant 256 : i32
    %5 = arith.muli %arg1, %c256_i32 : i32
    %6 = vector.broadcast %5 : i32 to vector<1x256xi32>
    %7 = arith.addi %6, %4 : vector<1x256xi32>
    %c256_i32_5 = arith.constant 256 : i32
    %8 = vector.broadcast %c256_i32_5 : i32 to vector<1x256xi32>
    %9 = arith.cmpi slt, %7, %8 : vector<1x256xi32>
    %c255_i32 = arith.constant 255 : i32
    %10 = vector.broadcast %c255_i32 : i32 to vector<1x256xi32>
    %11 = arith.cmpi ne, %3, %10 : vector<1x256xi32>
    %12 = arith.andi %11, %9 : vector<1x256xi1>
    %c0_i32 = arith.constant 0 : i32
    %13 = vector.broadcast %c0_i32 : i32 to vector<1x256xi32>
    %14 = arith.select %12, %3, %13 : vector<1x256xi1>, vector<1x256xi32>
    %cst = arith.constant dense<0xFF800000> : vector<256xf32>
    %15 = vector.multi_reduction <maximumf>, %1, %cst [0] : vector<8x256xf32> to vector<256xf32>
    %16 = vector.shape_cast %15 : vector<256xf32> to vector<1x256xf32>
    %17 = vector.broadcast %16 : vector<1x256xf32> to vector<8x256xf32>
    %18 = arith.subf %1, %17 : vector<8x256xf32>
    %19 = math.exp %18 : vector<8x256xf32>
    %cst_6 = arith.constant dense<0.000000e+00> : vector<256xf32>
    %20 = vector.multi_reduction <add>, %19, %cst_6 [0] : vector<8x256xf32> to vector<256xf32>
    %21 = vector.shape_cast %20 : vector<256xf32> to vector<1x256xf32>
    %22 = math.log %21 : vector<1x256xf32>
    %23 = tpu.iota {dimensions = array<i32: 0>} : vector<8x256xi32>
    %24 = vector.broadcast %14 : vector<1x256xi32> to vector<8x256xi32>
    %25 = arith.cmpi eq, %23, %24 : vector<8x256xi32>
    %cst_7 = arith.constant 0.000000e+00 : f32
    %26 = vector.broadcast %cst_7 : f32 to vector<8x256xf32>
    %27 = arith.select %25, %18, %26 : vector<8x256xi1>, vector<8x256xf32>
    %cst_8 = arith.constant dense<0.000000e+00> : vector<256xf32>
    %28 = vector.multi_reduction <add>, %27, %cst_8 [0] : vector<8x256xf32> to vector<256xf32>
    %29 = vector.shape_cast %28 : vector<256xf32> to vector<1x256xf32>
    %30 = arith.subf %22, %29 : vector<1x256xf32>
    %cst_9 = arith.constant 0.000000e+00 : f32
    %31 = vector.broadcast %cst_9 : f32 to vector<1x256xf32>
    %32 = arith.select %12, %30, %31 : vector<1x256xi1>, vector<1x256xf32>
    %c0_10 = arith.constant 0 : index
    %c0_11 = arith.constant 0 : index
    %c0_12 = arith.constant 0 : index
    %33 = vector.load %arg4[%c0_10, %c0_11, %c0_12] : memref<1x1x256xf32, #tpu.memory_space<vmem>>, vector<1x1x256xf32>
    %34 = vector.shape_cast %33 : vector<1x1x256xf32> to vector<1x256xf32>
    %35 = vector.shape_cast %32 : vector<1x256xf32> to vector<1x1x256xf32>
    tpu.vector_store %arg4[%c0_10, %c0_11, %c0_12], %35 {strides = array<i32>} : memref<1x1x256xf32, #tpu.memory_space<vmem>>, vector<1x1x256xf32>,
    %cst_13 = arith.constant 0.356674939 : f32
    %36 = vector.broadcast %cst_13 : f32 to vector<1x256xf32>
    %37 = arith.cmpf ogt, %32, %36 : vector<1x256xf32>
    %38 = arith.andi %37, %9 : vector<1x256xi1>
    %cst_14 = arith.constant 0.000000e+00 : f32
    %39 = vector.broadcast %cst_14 : f32 to vector<1x256xf32>
    %40 = arith.select %38, %32, %39 : vector<1x256xi1>, vector<1x256xf32>
    %cst_15 = arith.constant dense<0.000000e+00> : vector<1xf32>
    %41 = vector.multi_reduction <add>, %40, %cst_15 [1] : vector<1x256xf32> to vector<1xf32>
    %42 = vector.shape_cast %41 : vector<1xf32> to vector<1x1xf32>
    %43 = vector.shape_cast %42 : vector<1x1xf32> to vector<1x1xf32>
    %44 = vector.broadcast %43 : vector<1x1xf32> to vector<1x128xf32>
    %c0_16 = arith.constant 0 : index
    %c0_17 = arith.constant 0 : index
    %c0_18 = arith.constant 0 : index
    %c0_19 = arith.constant 0 : index
    %45 = vector.load %arg5[%c0_16, %c0_17, %c0_18, %c0_19] : memref<1x1x1x128xf32, #tpu.memory_space<vmem>>, vector<1x1x1x128xf32>
    %46 = vector.shape_cast %45 : vector<1x1x1x128xf32> to vector<1x128xf32>
    %47 = vector.shape_cast %44 : vector<1x128xf32> to vector<1x1x1x128xf32>
    tpu.vector_store %arg5[%c0_16, %c0_17, %c0_18, %c0_19], %47 {strides = array<i32>} : memref<1x1x1x128xf32, #tpu.memory_space<vmem>>, vector<1x1x1x128xf32>,
    %48 = arith.extui %38 : vector<1x256xi1> to vector<1x256xi32>
    %49 = arith.sitofp %48 : vector<1x256xi32> to vector<1x256xf32>
    %cst_20 = arith.constant dense<0.000000e+00> : vector<1xf32>
    %50 = vector.multi_reduction <add>, %49, %cst_20 [1] : vector<1x256xf32> to vector<1xf32>
    %51 = vector.shape_cast %50 : vector<1xf32> to vector<1x1xf32>
    %52 = vector.shape_cast %51 : vector<1x1xf32> to vector<1x1xf32>
    %53 = vector.broadcast %52 : vector<1x1xf32> to vector<1x128xf32>
    %c0_21 = arith.constant 0 : index
    %c0_22 = arith.constant 0 : index
    %c0_23 = arith.constant 0 : index
    %c0_24 = arith.constant 0 : index
    %54 = vector.load %arg6[%c0_21, %c0_22, %c0_23, %c0_24] : memref<1x1x1x128xf32, #tpu.memory_space<vmem>>, vector<1x1x1x128xf32>
    %55 = vector.shape_cast %54 : vector<1x1x1x128xf32> to vector<1x128xf32>
    %56 = vector.shape_cast %53 : vector<1x128xf32> to vector<1x1x1x128xf32>
    tpu.vector_store %arg6[%c0_21, %c0_22, %c0_23, %c0_24], %56 {strides = array<i32>} : memref<1x1x1x128xf32, #tpu.memory_space<vmem>>, vector<1x1x1x128xf32>,
    return
  }
  func.func @transform_0(%arg0: i32, %arg1: i32) -> (i32, i32, i32) {
    %c0_i32 = arith.constant 0 : i32
    %c0_i32_0 = arith.constant 0 : i32
    return %arg0, %c0_i32, %arg1 : i32, i32, i32
  }
  func.func @transform_1(%arg0: i32, %arg1: i32) -> (i32, i32, i32) {
    %c0_i32 = arith.constant 0 : i32
    %c0_i32_0 = arith.constant 0 : i32
    return %arg0, %c0_i32, %arg1 : i32, i32, i32
  }
  func.func @transform_2(%arg0: i32, %arg1: i32) -> (i32, i32, i32) {
    %c0_i32 = arith.constant 0 : i32
    %c0_i32_0 = arith.constant 0 : i32
    return %arg0, %c0_i32, %arg1 : i32, i32, i32
  }
  func.func @transform_3(%arg0: i32, %arg1: i32) -> (i32, i32, i32, i32) {
    %c0_i32 = arith.constant 0 : i32
    %c0_i32_0 = arith.constant 0 : i32
    %c0_i32_1 = arith.constant 0 : i32
    return %arg0, %arg1, %c0_i32, %c0_i32_0 : i32, i32, i32, i32
  }
  func.func @transform_4(%arg0: i32, %arg1: i32) -> (i32, i32, i32, i32) {
    %c0_i32 = arith.constant 0 : i32
    %c0_i32_0 = arith.constant 0 : i32
    %c0_i32_1 = arith.constant 0 : i32
    return %arg0, %arg1, %c0_i32, %c0_i32_0 : i32, i32, i32, i32
  }
}

</mosaic_0001>

<llo_original>
// kernel: tpu_custom_call.1
$region0: #{tpu_custom_call.1}
  #allocation0 [shape = 'u32[]', space=smem, size = 0x4, offset = 0x4, fixed_abs, tag = 'smem constant byte address 0x4 - core index']
  #allocation1 [shape = 'u32[72,128]{1,0:T(1,128)}', space=vmem, size = 0x9000, scoped, tag = 'internal scratch']
  %s0 = inlined_call_operand.hbm [shape: f32[2,8,256], index: 0, kind: input, shape index: {}]
  %s1 = inlined_call_operand.hbm [shape: s32[2,1,256], index: 1, kind: input, shape index: {}]
  %s2 = inlined_call_operand.hbm [shape: f32[2,1,256], index: 2, kind: output, shape index: {0}]
  %s3 = inlined_call_operand.hbm [shape: f32[2,1,1,128], index: 3, kind: output, shape index: {1}]
  %s4 = inlined_call_operand.hbm [shape: f32[2,1,1,128], index: 4, kind: output, shape index: {2}]
  %5 = xla_tuple %s2, %s3, %s4
  %s6 = sld [smem:[#allocation0]]
  $region65: #{tpu_custom_call.1} parent=0
    _
  %s8 = ssub.s32 1, %s6
  %s9 = scalar_select 0, %s8, %s6
  $region1: #{tpu_custom_call.1} parent=0
    #allocation2 [shape = 'u8[16384]{0}', space=vmem, size = 0x4000, scoped, tag = 'input window, operand 0']
    #allocation3 [shape = 's32[2]{0}', space=sflag, size = 0x8, scoped, tag = 'scoped memory for tpu_custom_call.1']
    #allocation4 [shape = 's32[2]{0}', space=sflag, size = 0x8, scoped, tag = 'scoped memory for tpu_custom_call.1']
    #allocation5 [shape = 'u8[2048]{0}', space=vmem, size = 0x800, scoped, tag = 'input window, operand 1']
    #allocation6 [shape = 's32[2]{0}', space=sflag, size = 0x8, scoped, tag = 'scoped memory for tpu_custom_call.1']
    #allocation7 [shape = 'u8[2048]{0}', space=vmem, size = 0x800, scoped, tag = 'output window, operand 0']
    #allocation8 [shape = 'u8[1024]{0}', space=vmem, size = 0x400, scoped, tag = 'output window, operand 1']
    #allocation9 [shape = 's32[2]{0}', space=sflag, size = 0x8, scoped, tag = 'scoped memory for tpu_custom_call.1']
    #allocation10 [shape = 'u8[1024]{0}', space=vmem, size = 0x400, scoped, tag = 'output window, operand 2']
    %10 = vsyncpa [#allocation3], 0
    %s11 = scalar_lea.sflag [#allocation3], 1
    %12 = vsyncpa %s11, 0
    %13 = vsyncpa [#allocation6], 0
    %s14 = scalar_lea.sflag [#allocation6], 1
    %15 = vsyncpa %s14, 0
    %16 = vsyncpa [#allocation4], 0
    %s17 = scalar_lea.sflag [#allocation4], 1
    %18 = vsyncpa %s17, 0
    %19 = vsyncpa [#allocation9], 0
    %s20 = scalar_lea.sflag [#allocation9], 1
    %21 = vsyncpa %s20, 0
    loop: start=0, step=1, limit=4
    $region2: #{tpu_custom_call.1} parent=1 // loop_pre_header
      _
    $region3: #{tpu_custom_call.1} parent=1 // loop_header
      %s23 = sphi 0, %s27
      %p24 = scmp.ge.s32.totalorder %s23, 4
      %s30 = sphi 0, %s42
      %s31 = sphi 0, %s38
      %s32 = sphi 0, %s30
      %s33 = sphi 0, %s31
      %s34 = sphi 0, %s32
      %s35 = sphi 0, %s33
      %s47 = sphi 0, %s49
      %s50 = sphi 0, %s47
      %s51 = sphi 0, %s50
      %s67 = sphi 0, %s51
      %s75 = sphi 0, %s77
      %s78 = sphi 0, %s75
      %s79 = sphi 0, %s78
      %s95 = sphi 0, %s79
      %s103 = sphi 0, %s105
      %s106 = sphi 0, %s103
      %s107 = sphi 0, %s106
      %s123 = sphi 0, %s107
      %s131 = sphi 0, %s133
      %s134 = sphi 0, %s131
      %s135 = sphi 0, %s134
      %s151 = sphi 0, %s135
      %s159 = sphi 0, %s161
      %s162 = sphi 0, %s159
      %s163 = sphi 0, %s162
      %s179 = sphi 0, %s163
    $region4: #{tpu_custom_call.1} parent=1 // loop_header_branch
      %26 = sbr.rel (%p24) target = $region8
    $region5: #{tpu_custom_call.1} parent=1 // loop_body
      %s28 = ssub.s32 %s23, 1
      %s29 = ssub.s32 %s23, 2
      %s36 = sadd.s32 1, %s31
      %p37 = scmp.ge.s32.totalorder %s36, 1
      %s38 = scalar_select %p37, 0, %s36
      %s39 = sadd.s32 1, %s30
      %s40 = scalar_select %p37, %s39, %s30
      %p41 = scmp.ge.s32.totalorder %s40, 2
      %s42 = scalar_select %p41, 0, %s40
      %s43 = ssub.s32 %s30, %s42
      %s44 = ssub.s32 %s31, %s38
      %s45 = sor.u32 %s43, %s44
      %p46 = scmp.eq.s32.totalorder %s45, 0
      %s48 = sadd.s32 %s47, 1
      %s49 = scalar_select %p46, %s47, %s48
      %p52 = pneg %p46
      %p53 = scmp.eq.s32.totalorder %s23, 1
      %p54 = por %p52, %p53
      %p55 = scmp.ne.s32.totalorder %s47, %s50
      %p56 = scmp.eq.s32.totalorder %s23, 0
      %p57 = por %p55, %p56
      %p58 = scmp.ne.s32.totalorder %s47, %s50
      %p59 = scmp.eq.s32.totalorder %s28, 1
      %p60 = por %p58, %p59
      %p61 = scmp.ne.s32.totalorder %s50, %s51
      %p62 = scmp.eq.s32.totalorder %s28, 0
      %p63 = por %p61, %p62
      %p64 = scmp.ne.s32.totalorder %s50, %s51
      %p65 = scmp.eq.s32.totalorder %s29, 1
      %p66 = por %p64, %p65
      %p68 = scmp.ne.s32.totalorder %s51, %s67
      %p69 = scmp.eq.s32.totalorder %s29, 0
      %p70 = por %p68, %p69
      %s71 = ssub.s32 %s30, %s42
      %s72 = ssub.s32 %s31, %s38
      %s73 = sor.u32 %s71, %s72
      %p74 = scmp.eq.s32.totalorder %s73, 0
      %s76 = sadd.s32 %s75, 1
      %s77 = scalar_select %p74, %s75, %s76
      %p80 = pneg %p74
      %p81 = scmp.eq.s32.totalorder %s23, 1
      %p82 = por %p80, %p81
      %p83 = scmp.ne.s32.totalorder %s75, %s78
      %p84 = scmp.eq.s32.totalorder %s23, 0
      %p85 = por %p83, %p84
      %p86 = scmp.ne.s32.totalorder %s75, %s78
      %p87 = scmp.eq.s32.totalorder %s28, 1
      %p88 = por %p86, %p87
      %p89 = scmp.ne.s32.totalorder %s78, %s79
      %p90 = scmp.eq.s32.totalorder %s28, 0
      %p91 = por %p89, %p90
      %p92 = scmp.ne.s32.totalorder %s78, %s79
      %p93 = scmp.eq.s32.totalorder %s29, 1
      %p94 = por %p92, %p93
      %p96 = scmp.ne.s32.totalorder %s79, %s95
      %p97 = scmp.eq.s32.totalorder %s29, 0
      %p98 = por %p96, %p97
      %s99 = ssub.s32 %s30, %s42
      %s100 = ssub.s32 %s31, %s38
      %s101 = sor.u32 %s99, %s100
      %p102 = scmp.eq.s32.totalorder %s101, 0
      %s104 = sadd.s32 %s103, 1
      %s105 = scalar_select %p102, %s103, %s104
      %p108 = pneg %p102
      %p109 = scmp.eq.s32.totalorder %s23, 1
      %p110 = por %p108, %p109
      %p111 = scmp.ne.s32.totalorder %s103, %s106
      %p112 = scmp.eq.s32.totalorder %s23, 0
      %p113 = por %p111, %p112
      %p114 = scmp.ne.s32.totalorder %s103, %s106
      %p115 = scmp.eq.s32.totalorder %s28, 1
      %p116 = por %p114, %p115
      %p117 = scmp.ne.s32.totalorder %s106, %s107
      %p118 = scmp.eq.s32.totalorder %s28, 0
      %p119 = por %p117, %p118
      %p120 = scmp.ne.s32.totalorder %s106, %s107
      %p121 = scmp.eq.s32.totalorder %s29, 1
      %p122 = por %p120, %p121
      %p124 = scmp.ne.s32.totalorder %s107, %s123
      %p125 = scmp.eq.s32.totalorder %s29, 0
      %p126 = por %p124, %p125
      %s127 = ssub.s32 %s30, %s42
      %s128 = ssub.s32 %s31, %s38
      %s129 = sor.u32 %s127, %s128
      %p130 = scmp.eq.s32.totalorder %s129, 0
      %s132 = sadd.s32 %s131, 1
      %s133 = scalar_select %p130, %s131, %s132
      %p136 = pneg %p130
      %p137 = scmp.eq.s32.totalorder %s23, 1
      %p138 = por %p136, %p137
      %p139 = scmp.ne.s32.totalorder %s131, %s134
      %p140 = scmp.eq.s32.totalorder %s23, 0
      %p141 = por %p139, %p140
      %p142 = scmp.ne.s32.totalorder %s131, %s134
      %p143 = scmp.eq.s32.totalorder %s28, 1
      %p144 = por %p142, %p143
      %p145 = scmp.ne.s32.totalorder %s134, %s135
      %p146 = scmp.eq.s32.totalorder %s28, 0
      %p147 = por %p145, %p146
      %p148 = scmp.ne.s32.totalorder %s134, %s135
      %p149 = scmp.eq.s32.totalorder %s29, 1
      %p150 = por %p148, %p149
      %p152 = scmp.ne.s32.totalorder %s135, %s151
      %p153 = scmp.eq.s32.totalorder %s29, 0
      %p154 = por %p152, %p153
      %s155 = ssub.s32 %s30, %s42
      %s156 = ssub.s32 %s31, %s38
      %s157 = sor.u32 %s155, %s156
      %p158 = scmp.eq.s32.totalorder %s157, 0
      %s160 = sadd.s32 %s159, 1
      %s161 = scalar_select %p158, %s159, %s160
      %p164 = pneg %p158
      %p165 = scmp.eq.s32.totalorder %s23, 1
      %p166 = por %p164, %p165
      %p167 = scmp.ne.s32.totalorder %s159, %s162
      %p168 = scmp.eq.s32.totalorder %s23, 0
      %p169 = por %p167, %p168
      %p170 = scmp.ne.s32.totalorder %s159, %s162
      %p171 = scmp.eq.s32.totalorder %s28, 1
      %p172 = por %p170, %p171
      %p173 = scmp.ne.s32.totalorder %s162, %s163
      %p174 = scmp.eq.s32.totalorder %s28, 0
      %p175 = por %p173, %p174
      %p176 = scmp.ne.s32.totalorder %s162, %s163
      %p177 = scmp.eq.s32.totalorder %s29, 1
      %p178 = por %p176, %p177
      %p180 = scmp.ne.s32.totalorder %s163, %s179
      %p181 = scmp.eq.s32.totalorder %s29, 0
      %p182 = por %p180, %p181
      %p183 = scmp.le.s32.totalorder 1, %s23
      %p184 = scmp.lt.s32.totalorder %s23, 3
      %p185 = pnand %p183, %p184
      %p186 = pneg %p185
      // Predicated region
      $region9: #{tpu_custom_call.1} parent=5 // pred_check
        _
      $region10: #{tpu_custom_call.1} parent=5 // pred_check_branch
        %188 = sbr.rel (%p185) target = $region12
      $region11: #{tpu_custom_call.1} parent=5 // pred_region
        %s189 = ssub.s32 %s23, 1
      $region12: #{tpu_custom_call.1} parent=5 // pred_fallthru
        _
      %p190 = scmp.lt.s32.totalorder %s23, 2
      // Predicated region
      $region13: #{tpu_custom_call.1} parent=5 // pred_check
        %p191 = pneg %p190
      $region14: #{tpu_custom_call.1} parent=5 // pred_check_branch
        %193 = sbr.rel (%p191) target = $region16
      $region15: #{tpu_custom_call.1} parent=5 // pred_region
        // Predicated region
        $region17: #{tpu_custom_call.1} parent=15 // pred_check
          %p194 = pneg %p57
        $region18: #{tpu_custom_call.1} parent=15 // pred_check_branch
          %196 = sbr.rel (%p194) target = $region20
        $region19: #{tpu_custom_call.1} parent=15 // pred_region
          %s197 = sand.u32 %s47, 1
          %s198 = scalar_lea.sflag [#allocation3], %s197
          %s199 = sand.u32 %s47, 1
          %s200 = smul.addr %s199, 16
          %s201 = scalar_lea.vmem [#allocation2], %s200
          %s202 = smul.u32 2, %s31
          %204 = vsyncadd %s198, 0
          %s205 = smul.addr %s30, 2
          %s206 = sadd.s32 %s202, %s205
          %s207 = smul.addr %s206, 8
          %s208 = scalar_lea.hbm %s0, %s207
          %s210 = sshll.u32 %s208, 4
          %s211 = int_to_ptr.hbm [resolvable:$true] %s210
          %s212 = sshll.u32 %s201, 4
          %s213 = int_to_ptr.vmem [resolvable:$true] %s212
          %215 = dma.hbm_to_vmem [thread:$0]  %s211, 256, %s213, %s198
        $region20: #{tpu_custom_call.1} parent=15 // pred_fallthru
          _
        // Predicated region
        $region21: #{tpu_custom_call.1} parent=15 // pred_check
          %p216 = pneg %p85
        $region22: #{tpu_custom_call.1} parent=15 // pred_check_branch
          %218 = sbr.rel (%p216) target = $region24
        $region23: #{tpu_custom_call.1} parent=15 // pred_region
          %s219 = sand.u32 %s75, 1
          %s220 = scalar_lea.sflag [#allocation6], %s219
          %s221 = sand.u32 %s75, 1
          %s222 = smul.addr %s221, 2
          %s223 = scalar_lea.vmem [#allocation5], %s222
          %s224 = smul.u32 2, %s31
          %226 = vsyncadd %s220, 0
          %s227 = smul.addr %s30, 2
          %s228 = sadd.s32 %s224, %s227
          %s229 = scalar_lea.hbm %s1, %s228
          %s231 = sshll.u32 %s229, 4
          %s232 = int_to_ptr.hbm [resolvable:$true] %s231
          %s233 = sshll.u32 %s223, 4
          %s234 = int_to_ptr.vmem [resolvable:$true] %s233
          %236 = dma.hbm_to_vmem [thread:$0]  %s232, 32, %s234, %s220
        $region24: #{tpu_custom_call.1} parent=15 // pred_fallthru
          _
      $region16: #{tpu_custom_call.1} parent=5 // pred_fallthru
        _
      %p237 = scmp.le.s32.totalorder 1, %s23
      %p238 = scmp.lt.s32.totalorder %s23, 3
      %p239 = pnand %p237, %p238
      %p240 = pneg %p239
      // Predicated region
      $region25: #{tpu_custom_call.1} parent=5 // pred_check
        _
      $region26: #{tpu_custom_call.1} parent=5 // pred_check_branch
        %242 = sbr.rel (%p239) target = $region28
      $region27: #{tpu_custom_call.1} parent=5 // pred_region
        %s243 = ssub.s32 %s23, 1
        %s244 = sand.u32 %s50, 1
        %s245 = scalar_lea.sflag [#allocation3], %s244
        %s246 = sand.u32 %s50, 1
        %s247 = smul.addr %s246, 16
        %s248 = scalar_lea.vmem [#allocation2], %s247
        // Predicated region
        $region29: #{tpu_custom_call.1} parent=27 // pred_check
          %p249 = pneg %p63
        $region30: #{tpu_custom_call.1} parent=27 // pred_check_branch
          %251 = sbr.rel (%p249) target = $region32
        $region31: #{tpu_custom_call.1} parent=27 // pred_region
          %253 = dma.done %s245, 256
        $region32: #{tpu_custom_call.1} parent=27 // pred_fallthru
          _
        %s254 = sand.u32 %s78, 1
        %s255 = scalar_lea.sflag [#allocation6], %s254
        %s256 = sand.u32 %s78, 1
        %s257 = smul.addr %s256, 2
        %s258 = scalar_lea.vmem [#allocation5], %s257
        // Predicated region
        $region33: #{tpu_custom_call.1} parent=27 // pred_check
          %p259 = pneg %p91
        $region34: #{tpu_custom_call.1} parent=27 // pred_check_branch
          %261 = sbr.rel (%p259) target = $region36
        $region35: #{tpu_custom_call.1} parent=27 // pred_region
          %263 = dma.done %s255, 32
        $region36: #{tpu_custom_call.1} parent=27 // pred_fallthru
          _
        %s264 = sand.u32 %s50, 1
        %s265 = scalar_lea.sflag [#allocation3], %s264
        %s266 = sand.u32 %s50, 1
        %s267 = smul.addr %s266, 16
        %s268 = scalar_lea.vmem [#allocation2], %s267
        %p269 = pneg %p63
        %p270 = pneg %p60
        %s271 = sand.u32 %s78, 1
        %s272 = scalar_lea.sflag [#allocation6], %s271
        %s273 = sand.u32 %s78, 1
        %s274 = smul.addr %s273, 2
        %s275 = scalar_lea.vmem [#allocation5], %s274
        %p276 = pneg %p91
        %p277 = pneg %p88
        %p278 = pneg %p119
        %p279 = pneg %p116
        %s280 = sand.u32 %s106, 1
        %s281 = scalar_lea.sflag [#allocation4], %s280
        %s282 = sand.u32 %s106, 1
        %s283 = smul.addr %s282, 2
        %s284 = scalar_lea.vmem [#allocation7], %s283
        %p285 = pneg %p147
        %p286 = pneg %p144
        %s287 = sand.u32 %s28, 1
        %s288 = scalar_lea.sflag [#allocation9], %s287
        %s289 = sand.u32 %s134, 1
        %s290 = scalar_lea.vmem [#allocation8], %s289
        %p291 = pneg %p175
        %p292 = pneg %p172
        %s293 = sand.u32 %s28, 1
        %s294 = scalar_lea.sflag [#allocation9], %s293
        %s295 = sand.u32 %s162, 1
        %s296 = scalar_lea.vmem [#allocation10], %s295
        %s297 = smul.u32 2, %s33
        %s298 = smul.u32 2, %s33
        %s299 = smul.u32 2, %s33
        %v300 = vld [vmem:[%s248] sm:$0xff]
        %v301 = vld [vmem:[%s248 + $0x8] sm:$0xff]
        %v302 = vld [vmem:[%s258] sm:$0x3]
        %v303 = vlaneseq
        %v304 = vand.u32 %v303, 127
        %v305 = vadd.s32 %v304, 128
        %s306 = smul.u32 %s33, 256
        %v307 = vstv %s306
        %v308 = vadd.s32 %v307, %v304
        %v309 = vadd.s32 %v307, %v305
        %vm310 = vcmp.lt.s32.totalorder %v308, 256
        %vm311 = vcmp.lt.s32.totalorder %v309, 256
        %vm312 = vcmp.ne.s32.totalorder %v302, 255
        %v313 = vsel %vm310, 1, 0
        %v314 = vsel %vm311, 1, 0
        %v315 = vrot.slane %v314, 7
        %vm316 = vcmask 1040384
        %v317 = vsel %vm316, %v313, %v315
        %vm318 = vcmp.ne.s32.totalorder %v317, 0
        %vm319 = vmand %vm312, %vm318
        %v320 = vsel %vm319, %v302, 0
        %v321 = vrot.slane %v300, 4
        %v322 = vmax.f32 %v300, %v321
        %v323 = vrot.slane %v322, 2
        %v324 = vmax.f32 %v322, %v323
        %v325 = vrot.slane %v324, 1
        %v326 = vmax.f32 %v324, %v325
        %v327 = vrot.slane %v301, 4
        %v328 = vmax.f32 %v301, %v327
        %v329 = vrot.slane %v328, 2
        %v330 = vmax.f32 %v328, %v329
        %v331 = vrot.slane %v330, 1
        %v332 = vmax.f32 %v330, %v331
        %v333 = vsub.f32 %v300, %v326
        %v334 = vsub.f32 %v301, %v332
        %v335 = vmul.f32 %v333, 1.442695
        %v336 = vpow.pop %v335
        %v337 = vmul.f32 %v334, 1.442695
        %v338 = vpow.pop %v337
        %v339 = vrot.slane %v336, 4
        %v340 = vadd.f32 %v336, %v339
        %v341 = vrot.slane %v340, 2
        %v342 = vadd.f32 %v340, %v341
        %v343 = vrot.slane %v342, 1
        %v344 = vadd.f32 %v342, %v343
        %v345 = vrot.slane %v338, 4
        %v346 = vadd.f32 %v338, %v345
        %v347 = vrot.slane %v346, 2
        %v348 = vadd.f32 %v346, %v347
        %v349 = vrot.slane %v348, 1
        %v350 = vadd.f32 %v348, %v349
        %v351 = vlog2.pop %v344
        %v352 = vmul.f32 %v351, 0.6931472
        %v353 = vlog2.pop %v350
        %v354 = vmul.f32 %v353, 0.6931472
        %v355 = vlaneseq
        %v356 = vshrl.u32 %v355, 7
        %v357 = vperm.slane %v320, 0
        %v358 = vperm.slane %v320, 1
        %vm359 = vcmp.eq.s32.totalorder %v356, %v357
        %vm360 = vcmp.eq.s32.totalorder %v356, %v358
        %v361 = vsel %vm359, %v333, 0.0
        %v362 = vsel %vm360, %v334, 0.0
        %v363 = vrot.slane %v361, 4
        %v364 = vadd.f32 %v361, %v363
        %v365 = vrot.slane %v364, 2
        %v366 = vadd.f32 %v364, %v365
        %v367 = vrot.slane %v366, 1
        %v368 = vadd.f32 %v366, %v367
        %v369 = vrot.slane %v362, 4
        %v370 = vadd.f32 %v362, %v369
        %v371 = vrot.slane %v370, 2
        %v372 = vadd.f32 %v370, %v371
        %v373 = vrot.slane %v372, 1
        %v374 = vadd.f32 %v372, %v373
        %v375 = vsub.f32 %v352, %v368
        %v376 = vsub.f32 %v354, %v374
        %v379 = vrot.slane %v376, 7
        %v380 = vsel %vm316, %v375, %v379
        %v382 = vsel %vm319, %v380, 0.0
        %v383 = vlaneseq
        %vm384 = vcmp.ge.s32.totalorder %v383, 0
        %vm385 = vcmp.lt.s32.totalorder %v383, 256
        %vm386 = vmand %vm384, %vm385
        %387 = vst.msk [vmem:[%s284] sm:$0x3] %vm386, %v382
        %vm388 = vcmp.gt.f32.partialorder %v382, 0.35667494
        %vm389 = vmand %vm388, %vm318
        %v390 = vsel %vm389, %v382, 0.0
        %v392 = vperm.slane %v390, 0
        %v393 = vperm.slane %v390, 1
        %v396 = vsel %vm316, %v392, 0.0
        %v397 = vsel %vm316, %v393, 0.0
        %v398 = vadd.f32 %v396, %v397
        %399 = vadd.xlane.f32.xlu0 %v398
        %v400 = vpop.xlane.xlu0 %399
        %401 = vst [vmem:[%s290] sm:$0x1] %v400
        %v402 = vsel %vm389, 1, 0
        %v403 = vcvt.s32.f32 %v402
        %v405 = vperm.slane %v403, 0
        %v406 = vperm.slane %v403, 1
        %v409 = vsel %vm316, %v405, 0.0
        %v410 = vsel %vm316, %v406, 0.0
        %v411 = vadd.f32 %v409, %v410
        %412 = vadd.xlane.f32.xlu0 %v411
        %v413 = vpop.xlane.xlu0 %412
        %414 = vst [vmem:[%s296] sm:$0x1] %v413
        %s415 = sand.u32 %s106, 1
        %s416 = scalar_lea.sflag [#allocation4], %s415
        %s417 = sand.u32 %s106, 1
        %s418 = smul.addr %s417, 2
        %s419 = scalar_lea.vmem [#allocation7], %s418
        %s420 = sand.u32 %s28, 1
        %s421 = scalar_lea.sflag [#allocation9], %s420
        %s422 = sand.u32 %s134, 1
        %s423 = scalar_lea.vmem [#allocation8], %s422
        %s424 = sand.u32 %s28, 1
        %s425 = scalar_lea.sflag [#allocation9], %s424
        %s426 = sand.u32 %s162, 1
        %s427 = scalar_lea.vmem [#allocation10], %s426
        // Predicated region
        $region37: #{tpu_custom_call.1} parent=27 // pred_check
          %p428 = pneg %p116
        $region38: #{tpu_custom_call.1} parent=27 // pred_check_branch
          %430 = sbr.rel (%p428) target = $region40
        $region39: #{tpu_custom_call.1} parent=27 // pred_region
          %s431 = smul.u32 2, %s33
          %433 = vsyncadd %s416, 0
          %s434 = smul.addr %s32, 2
          %s435 = sadd.s32 %s431, %s434
          %s436 = scalar_lea.hbm %s2, %s435
          %s438 = sshll.u32 %s419, 4
          %s439 = int_to_ptr.vmem [resolvable:$true] %s438
          %s440 = sshll.u32 %s436, 4
          %s441 = int_to_ptr.hbm [resolvable:$true] %s440
          %443 = dma.vmem_to_hbm [thread:$0]  %s439, 32, %s441, %s416
        $region40: #{tpu_custom_call.1} parent=27 // pred_fallthru
          _
        // Predicated region
        $region41: #{tpu_custom_call.1} parent=27 // pred_check
          %p444 = pneg %p144
        $region42: #{tpu_custom_call.1} parent=27 // pred_check_branch
          %446 = sbr.rel (%p444) target = $region44
        $region43: #{tpu_custom_call.1} parent=27 // pred_region
          %448 = vsyncadd %s421, 0
          %s449 = sadd.s32 %s33, %s32
          %s450 = scalar_lea.hbm %s3, %s449
          %s452 = sshll.u32 %s423, 4
          %s453 = int_to_ptr.vmem [resolvable:$true] %s452
          %s454 = sshll.u32 %s450, 4
          %s455 = int_to_ptr.hbm [resolvable:$true] %s454
          %457 = dma.vmem_to_hbm [thread:$0]  %s453, 16, %s455, %s421
        $region44: #{tpu_custom_call.1} parent=27 // pred_fallthru
          _
        // Predicated region
        $region45: #{tpu_custom_call.1} parent=27 // pred_check
          %p458 = pneg %p172
        $region46: #{tpu_custom_call.1} parent=27 // pred_check_branch
          %460 = sbr.rel (%p458) target = $region48
        $region47: #{tpu_custom_call.1} parent=27 // pred_region
          %462 = vsyncadd %s425, 0
          %s463 = sadd.s32 %s33, %s32
          %s464 = scalar_lea.hbm %s4, %s463
          %s466 = sshll.u32 %s427, 4
          %s467 = int_to_ptr.vmem [resolvable:$true] %s466
          %s468 = sshll.u32 %s464, 4
          %s469 = int_to_ptr.hbm [resolvable:$true] %s468
          %471 = dma.vmem_to_hbm [thread:$0]  %s467, 16, %s469, %s425
        $region48: #{tpu_custom_call.1} parent=27 // pred_fallthru
          _
      $region28: #{tpu_custom_call.1} parent=5 // pred_fallthru
        _
      %p472 = scmp.le.s32.totalorder 2, %s23
      // Predicated region
      $region49: #{tpu_custom_call.1} parent=5 // pred_check
        %p473 = pneg %p472
      $region50: #{tpu_custom_call.1} parent=5 // pred_check_branch
        %475 = sbr.rel (%p473) target = $region52
      $region51: #{tpu_custom_call.1} parent=5 // pred_region
        %s476 = ssub.s32 %s23, 2
        // Predicated region
        $region53: #{tpu_custom_call.1} parent=51 // pred_check
          %p477 = pneg %p122
        $region54: #{tpu_custom_call.1} parent=51 // pred_check_branch
          %479 = sbr.rel (%p477) target = $region56
        $region55: #{tpu_custom_call.1} parent=51 // pred_region
          %s480 = sand.u32 %s107, 1
          %s481 = scalar_lea.sflag [#allocation4], %s480
          %s482 = sand.u32 %s107, 1
          %s483 = smul.addr %s482, 2
          %s484 = scalar_lea.vmem [#allocation7], %s483
          %486 = dma.done %s481, 32
        $region56: #{tpu_custom_call.1} parent=51 // pred_fallthru
          _
        // Predicated region
        $region57: #{tpu_custom_call.1} parent=51 // pred_check
          %p487 = pneg %p150
        $region58: #{tpu_custom_call.1} parent=51 // pred_check_branch
          %489 = sbr.rel (%p487) target = $region60
        $region59: #{tpu_custom_call.1} parent=51 // pred_region
          %s490 = sand.u32 %s29, 1
          %s491 = scalar_lea.sflag [#allocation9], %s490
          %s492 = sand.u32 %s135, 1
          %s493 = scalar_lea.vmem [#allocation8], %s492
          %495 = dma.done %s491, 16
        $region60: #{tpu_custom_call.1} parent=51 // pred_fallthru
          _
        // Predicated region
        $region61: #{tpu_custom_call.1} parent=51 // pred_check
          %p496 = pneg %p178
        $region62: #{tpu_custom_call.1} parent=51 // pred_check_branch
          %498 = sbr.rel (%p496) target = $region64
        $region63: #{tpu_custom_call.1} parent=51 // pred_region
          %s499 = sand.u32 %s29, 1
          %s500 = scalar_lea.sflag [#allocation9], %s499
          %s501 = sand.u32 %s163, 1
          %s502 = scalar_lea.vmem [#allocation10], %s501
          %504 = dma.done %s500, 16
        $region64: #{tpu_custom_call.1} parent=51 // pred_fallthru
          _
      $region52: #{tpu_custom_call.1} parent=5 // pred_fallthru
        _
    $region6: #{tpu_custom_call.1} parent=1 // loop_footer
      %s27 = sadd.s32 1, %s23
    $region7: #{tpu_custom_call.1} parent=1 // loop_footer_branch
      %22 = sbr.rel target = $region3
    $region8: #{tpu_custom_call.1} parent=1 // loop_exit
      _
    %505 = vsyncpa [#allocation3], 1
    %s506 = scalar_lea.sflag [#allocation3], 1
    %507 = vsyncpa %s506, 1
    %508 = vsyncpa [#allocation6], 1
    %s509 = scalar_lea.sflag [#allocation6], 1
    %510 = vsyncpa %s509, 1
    %511 = vsyncpa [#allocation4], 1
    %s512 = scalar_lea.sflag [#allocation4], 1
    %513 = vsyncpa %s512, 1
    %514 = vsyncpa [#allocation9], 1
    %s515 = scalar_lea.sflag [#allocation9], 1
    %516 = vsyncpa %s515, 1

</llo_original>
